<compile_context>
chip_gen: v6e
topology: v6e:2x2x1
jax: 0.10.0
libtpu: 0.0.40
codegen_flags: <defaults>
</compile_context>

<pallas_src>
import functools

import numpy as np
import jax
import jax.numpy as jnp
from jax.experimental import pallas as pl
from jax.experimental.pallas import tpu as pltpu


def _wce_tile_kernel(logits_ref, labels_ref, wex_ref, part_ref, *, batch, tile_b):
    """One batch tile of per-class-weighted cross entropy.

    logits_ref: (TB, C)    logits (any float dtype; cast to f32 in-kernel)
    labels_ref: (TB, 1)    int32 target class per row
    wex_ref:    (TB, 1)    f32 per-example weight
    part_ref:   (1, 8, 128) f32 tile partial sum of w_i * nll_i (lane-dense)

    The trailing grid tile may be partial; rows >= batch are masked in-kernel
    (no host-side batch padding).
    """
    i = pl.program_id(0)

    x = logits_ref[...].astype(jnp.float32)                  # (TB, C)
    lbl = labels_ref[...]                                     # (TB, 1) int32
    w = wex_ref[...]                                          # (TB, 1) f32

    # row-validity mask for the (possibly partial) trailing tile
    row = jax.lax.broadcasted_iota(jnp.int32, (tile_b, 1), 0)  # (TB, 1)
    row_valid = (row + i * tile_b) < batch                      # (TB, 1) bool

    # keep out-of-bounds garbage rows finite before the LSE
    x = jnp.where(row_valid, x, 0.0)                          # (TB, C)

    # exact log-sum-exp over the class (lane) axis
    m = jnp.max(x, axis=1, keepdims=True)                     # (TB, 1)
    e = jnp.exp(x - m)                                        # (TB, C)
    lse = m + jnp.log(jnp.sum(e, axis=1, keepdims=True))      # (TB, 1)

    # logit at the target class via fused one-hot select (no bool->f32 cast)
    cls = jax.lax.broadcasted_iota(jnp.int32, x.shape, 1)     # (TB, C)
    xt = jnp.sum(jnp.where(cls == lbl, x, 0.0),
                 axis=1, keepdims=True)                       # (TB, 1)

    nll = lse - xt                                            # (TB, 1)
    contrib = jnp.where(row_valid, w * nll, 0.0)              # garbage rows -> 0
    s = jnp.sum(contrib)                                      # tile scalar
    part_ref[...] = jnp.broadcast_to(s, part_ref.shape)       # lane-dense store


def _cdb_weights(class_difficulty, tau='dynamic', normalize=True, epsilon=0.01):
    """Class-difficulty-balanced per-class weights (numpy, matches torch glue)."""
    cd = np.asarray(class_difficulty, dtype=np.float64)
    if tau == 'dynamic':
        bias = (1.0 - np.min(cd)) / (1.0 - np.max(cd) + epsilon) - 1.0
        t = 2.0 / (1.0 + np.exp(-bias))          # 2 * sigmoid(bias)
    else:
        t = float(tau)
    w = cd ** t
    if normalize:
        w = w / w.sum() * len(w)
    return w.astype(np.float32)


def _round_up(x, m):
    return (x + m - 1) // m * m


def class_diff_loss(logits, targets, class_difficulty=None, tau='dynamic',
                    normalize=True, epsilon=0.01, *, block_b=2048,
                    vmem_budget_bytes=20 << 20):
    """JAX/Pallas equivalent of ClassDiffLoss.forward (CrossEntropy path)."""
    B, C = logits.shape
    in_bytes = jnp.dtype(logits.dtype).itemsize

    if class_difficulty is not None and len(class_difficulty) > 0:
        w_cls = _cdb_weights(class_difficulty, tau, normalize, epsilon)
    else:
        w_cls = np.ones((C,), dtype=np.float32)   # plain CrossEntropyLoss
    w_cls = jnp.asarray(w_cls, dtype=jnp.float32)

    targets = targets.astype(jnp.int32)
    w_ex = w_cls[targets]                          # (B,) per-example weight

    # ---- VMEM-aware batch tile (no class-axis or batch padding in HBM) ----
    align = max(8, 32 // in_bytes)                 # 8 f32 / 16 bf16 / 32 int8
    # budget: double-buffered logits tile + ~3 full-tile f32 temporaries
    per_row_bytes = 2 * C * in_bytes + 3 * C * 4
    tb_vmem = max(align, (vmem_budget_bytes // per_row_bytes) // align * align)
    tb_two = _round_up(-(-B // 2), align)          # aim for >=2 tiles (v7x megacore)
    TB = max(align, min(tb_vmem, block_b, tb_two))
    if TB >= B:
        TB = B                                     # one full-array tile (always legal)
    num_tiles = -(-B // TB)

    labels_col = targets.reshape(B, 1)
    w_ex_col = w_ex.reshape(B, 1)

    # explicit scoped-VMEM hint: pipeline buffers + temporaries + headroom,
    # capped well under v7x's 64 MiB physical VMEM
    est = (2 * TB * C * in_bytes       # logits double buffer
           + 4 * TB * C * 4            # in-kernel f32 temporaries (generous)
           + 2 * TB * 8                # labels + weights double buffers
           + 2 * 8 * 128 * 4)          # output double buffer
    vmem_limit = int(min(48 << 20, max(8 << 20, est + (4 << 20))))

    kernel = functools.partial(_wce_tile_kernel, batch=B, tile_b=TB)

    partials = pl.pallas_call(
        kernel,
        out_shape=jax.ShapeDtypeStruct((num_tiles, 8, 128), jnp.float32),
        grid_spec=pltpu.PrefetchScalarGridSpec(
            num_scalar_prefetch=0,
            grid=(num_tiles,),
            in_specs=[
                pl.BlockSpec((TB, C), lambda i: (i, 0)),   # logits tile (full C)
                pl.BlockSpec((TB, 1), lambda i: (i, 0)),   # labels column
                pl.BlockSpec((TB, 1), lambda i: (i, 0)),   # per-example weights
            ],
            out_specs=pl.BlockSpec((1, 8, 128), lambda i: (i, 0, 0)),
        ),
        compiler_params=pltpu.CompilerParams(
            dimension_semantics=("parallel",),
            vmem_limit_bytes=vmem_limit),
    )(logits, labels_col, w_ex_col)

    # tiny final reduce; torch's weighted CE mean divides by sum of target weights
    numerator = jnp.sum(partials[:, 0, 0])
    denominator = jnp.sum(w_ex)
    return numerator / denominator


def _reference_jax(logits, targets, w_cls):
    """Pure-JAX reference for weighted CrossEntropyLoss (reduction='mean')."""
    logp = jax.nn.log_softmax(logits.astype(jnp.float32), axis=1)
    nll = -jnp.take_along_axis(logp, targets[:, None].astype(jnp.int32),
                               axis=1)[:, 0]
    w = w_cls[targets]
    return jnp.sum(w * nll) / jnp.sum(w)


if __name__ == "__main__":
    key = jax.random.PRNGKey(0)

    # --- test 1: small ragged problem, f32, CDB-weighted CE -----------------
    B, C = 10, 7
    k1, k2, key = jax.random.split(key, 3)
    logits = jax.random.normal(k1, (B, C), dtype=jnp.float32)
    targets = jax.random.randint(k2, (B,), 0, C, dtype=jnp.int32)
    class_difficulty = np.linspace(0.2, 0.9, C)   # deterministic difficulties

    loss = class_diff_loss(logits, targets, class_difficulty,
                           tau='dynamic', normalize=True, epsilon=0.01)
    loss = jax.block_until_ready(loss)

    w_cls = jnp.asarray(_cdb_weights(class_difficulty), dtype=jnp.float32)
    ref = jax.block_until_ready(_reference_jax(logits, targets, w_cls))
    assert jnp.allclose(loss, ref, rtol=1e-5, atol=1e-6), (loss, ref)

    # --- test 2: bf16 logits, C > 128, empty class_difficulty (plain CE),
    #             ragged trailing tile (B=24, TB=16) --------------------------
    B2, C2 = 24, 130
    k3, k4 = jax.random.split(key)
    logits2 = jax.random.normal(k3, (B2, C2), dtype=jnp.float32).astype(jnp.bfloat16)
    targets2 = jax.random.randint(k4, (B2,), 0, C2, dtype=jnp.int32)

    loss2 = class_diff_loss(logits2, targets2, class_difficulty=None)
    loss2 = jax.block_until_ready(loss2)

    w_ones = jnp.ones((C2,), dtype=jnp.float32)
    ref2 = jax.block_until_ready(_reference_jax(logits2, targets2, w_ones))
    assert jnp.allclose(loss2, ref2, rtol=1e-4, atol=1e-4), (loss2, ref2)

    print("KERNEL_OK")
</pallas_src>

<mosaic_0001>
module attributes {stable_mosaic.version = 11 : i64} {
  func.func @_wce_tile_kernel(%arg0: i32, %arg1: memref<8x7xf32, #tpu.memory_space<vmem>>, %arg2: memref<8x1xi32, #tpu.memory_space<vmem>>, %arg3: memref<8x1xf32, #tpu.memory_space<vmem>>, %arg4: memref<1x8x128xf32, #tpu.memory_space<vmem>>) attributes {dimension_semantics = [#tpu.dimension_semantics<parallel>], iteration_bounds = array<i64: 2>, scalar_prefetch = 0 : i64, scratch_operands = 0 : i64, tpu.core_type = #tpu.core_type<tc>, window_params = [{transform_indices = @transform_0, window_bounds = array<i64: 8, 7>}, {transform_indices = @transform_1, window_bounds = array<i64: 8, 1>}, {transform_indices = @transform_2, window_bounds = array<i64: 8, 1>}, {transform_indices = @transform_3, window_bounds = array<i64: 1, 8, 128>}]} {
    %c0 = arith.constant 0 : index
    %c0_0 = arith.constant 0 : index
    %0 = vector.load %arg1[%c0, %c0_0] : memref<8x7xf32, #tpu.memory_space<vmem>>, vector<8x7xf32>
    %c0_1 = arith.constant 0 : index
    %c0_2 = arith.constant 0 : index
    %1 = vector.load %arg2[%c0_1, %c0_2] : memref<8x1xi32, #tpu.memory_space<vmem>>, vector<8x1xi32>
    %c0_3 = arith.constant 0 : index
    %c0_4 = arith.constant 0 : index
    %2 = vector.load %arg3[%c0_3, %c0_4] : memref<8x1xf32, #tpu.memory_space<vmem>>, vector<8x1xf32>
    %3 = tpu.iota {dimensions = array<i32: 0>} : vector<8x1xi32>
    %c8_i32 = arith.constant 8 : i32
    %4 = arith.muli %arg0, %c8_i32 : i32
    %5 = vector.broadcast %4 : i32 to vector<8x1xi32>
    %6 = arith.addi %3, %5 : vector<8x1xi32>
    %c10_i32 = arith.constant 10 : i32
    %7 = vector.broadcast %c10_i32 : i32 to vector<8x1xi32>
    %8 = arith.cmpi slt, %6, %7 : vector<8x1xi32>
    %cst = arith.constant 0.000000e+00 : f32
    %9 = vector.shape_cast %8 : vector<8x1xi1> to vector<8x1xi1>
    %10 = vector.broadcast %9 : vector<8x1xi1> to vector<8x7xi1>
    %11 = vector.broadcast %cst : f32 to vector<8x7xf32>
    %12 = arith.select %10, %0, %11 : vector<8x7xi1>, vector<8x7xf32>
    %cst_5 = arith.constant dense<0xFF800000> : vector<8xf32>
    %13 = vector.multi_reduction <maximumf>, %12, %cst_5 [1] : vector<8x7xf32> to vector<8xf32>
    %14 = vector.shape_cast %13 : vector<8xf32> to vector<8x1xf32>
    %15 = vector.broadcast %14 : vector<8x1xf32> to vector<8x7xf32>
    %16 = arith.subf %12, %15 : vector<8x7xf32>
    %17 = math.exp %16 : vector<8x7xf32>
    %cst_6 = arith.constant dense<0.000000e+00> : vector<8xf32>
    %18 = vector.multi_reduction <add>, %17, %cst_6 [1] : vector<8x7xf32> to vector<8xf32>
    %19 = vector.shape_cast %18 : vector<8xf32> to vector<8x1xf32>
    %20 = math.log %19 : vector<8x1xf32>
    %21 = arith.addf %14, %20 : vector<8x1xf32>
    %22 = tpu.iota {dimensions = array<i32: 1>} : vector<8x7xi32>
    %23 = vector.broadcast %1 : vector<8x1xi32> to vector<8x7xi32>
    %24 = arith.cmpi eq, %22, %23 : vector<8x7xi32>
    %cst_7 = arith.constant 0.000000e+00 : f32
    %25 = vector.broadcast %cst_7 : f32 to vector<8x7xf32>
    %26 = arith.select %24, %12, %25 : vector<8x7xi1>, vector<8x7xf32>
    %cst_8 = arith.constant dense<0.000000e+00> : vector<8xf32>
    %27 = vector.multi_reduction <add>, %26, %cst_8 [1] : vector<8x7xf32> to vector<8xf32>
    %28 = vector.shape_cast %27 : vector<8xf32> to vector<8x1xf32>
    %29 = arith.subf %21, %28 : vector<8x1xf32>
    %30 = arith.mulf %2, %29 : vector<8x1xf32>
    %cst_9 = arith.constant 0.000000e+00 : f32
    %31 = vector.broadcast %cst_9 : f32 to vector<8x1xf32>
    %32 = arith.select %8, %30, %31 : vector<8x1xi1>, vector<8x1xf32>
    %33 = vector.shape_cast %32 : vector<8x1xf32> to vector<1x8x1xf32>
    %cst_10 = arith.constant dense<0.000000e+00> : vector<1xf32>
    %34 = vector.multi_reduction <add>, %33, %cst_10 [1, 2] : vector<1x8x1xf32> to vector<1xf32>
    %35 = vector.shape_cast %34 : vector<1xf32> to vector<1x1x1xf32>
    %36 = vector.extract %35[0, 0, 0] : f32 from vector<1x1x1xf32>
    %37 = vector.broadcast %36 : f32 to vector<1x8x128xf32>
    %c0_11 = arith.constant 0 : index
    %c0_12 = arith.constant 0 : index
    %c0_13 = arith.constant 0 : index
    %38 = vector.load %arg4[%c0_11, %c0_12, %c0_13] : memref<1x8x128xf32, #tpu.memory_space<vmem>>, vector<1x8x128xf32>
    tpu.vector_store %arg4[%c0_11, %c0_12, %c0_13], %37 {strides = array<i32>} : memref<1x8x128xf32, #tpu.memory_space<vmem>>, vector<1x8x128xf32>,
    return
  }
  func.func @transform_0(%arg0: i32) -> (i32, i32) {
    %c0_i32 = arith.constant 0 : i32
    %c0_i32_0 = arith.constant 0 : i32
    return %arg0, %c0_i32 : i32, i32
  }
  func.func @transform_1(%arg0: i32) -> (i32, i32) {
    %c0_i32 = arith.constant 0 : i32
    %c0_i32_0 = arith.constant 0 : i32
    return %arg0, %c0_i32 : i32, i32
  }
  func.func @transform_2(%arg0: i32) -> (i32, i32) {
    %c0_i32 = arith.constant 0 : i32
    %c0_i32_0 = arith.constant 0 : i32
    return %arg0, %c0_i32 : i32, i32
  }
  func.func @transform_3(%arg0: i32) -> (i32, i32, i32) {
    %c0_i32 = arith.constant 0 : i32
    %c0_i32_0 = arith.constant 0 : i32
    %c0_i32_1 = arith.constant 0 : i32
    return %arg0, %c0_i32, %c0_i32_0 : i32, i32, i32
  }
}

</mosaic_0001>

<llo_original>
// kernel: tpu_custom_call.1
$region0: #{tpu_custom_call.1}
  #allocation0 [shape = 'u32[]', space=smem, size = 0x4, offset = 0x4, fixed_abs, tag = 'smem constant byte address 0x4 - core index']
  #allocation1 [shape = 'u32[144,128]{1,0:T(1,128)}', space=vmem, size = 0x12000, scoped, tag = 'internal scratch']
  %s0 = inlined_call_operand.vmem [shape: f32[10,7], index: 0, kind: input, shape index: {}]
  %s1 = inlined_call_operand.vmem [shape: s32[10,1], index: 1, kind: input, shape index: {}]
  %s2 = inlined_call_operand.vmem [shape: f32[10,1], index: 2, kind: input, shape index: {}]
  %s3 = inlined_call_operand.hbm [shape: f32[2,8,128], index: 3, kind: output, shape index: {}]
  %s4 = sld [smem:[#allocation0]]
  $region45: #{tpu_custom_call.1} parent=0
    _
  %s6 = ssub.s32 1, %s4
  %s7 = scalar_select 0, %s6, %s4
  $region1: #{tpu_custom_call.1} parent=0
    #allocation2 [shape = 'u8[8192]{0}', space=vmem, size = 0x2000, scoped, tag = 'output window, operand 0']
    #allocation3 [shape = 's32[2]{0}', space=sflag, size = 0x8, scoped, tag = 'scoped memory for tpu_custom_call.1']
    %8 = vsyncpa [#allocation3], 0
    %s9 = scalar_lea.sflag [#allocation3], 1
    %10 = vsyncpa %s9, 0
    loop: start=0, step=1, limit=4
    $region2: #{tpu_custom_call.1} parent=1 // loop_pre_header
      _
    $region3: #{tpu_custom_call.1} parent=1 // loop_header
      %s12 = sphi 0, %s16
      %p13 = scmp.ge.s32.totalorder %s12, 4
      %s22 = sphi 0, %s24
      %s25 = sphi 0, %s22
      %s26 = sphi 0, %s25
      %s42 = sphi 0, %s26
      %s48 = sphi 0, %s50
      %s51 = sphi 0, %s48
      %s52 = sphi 0, %s51
      %s68 = sphi 0, %s52
      %s74 = sphi 0, %s76
      %s77 = sphi 0, %s74
      %s78 = sphi 0, %s77
      %s94 = sphi 0, %s78
      %s100 = sphi 0, %s102
      %s103 = sphi 0, %s100
      %s104 = sphi 0, %s103
      %s120 = sphi 0, %s104
    $region4: #{tpu_custom_call.1} parent=1 // loop_header_branch
      %15 = sbr.rel (%p13) target = $region8
    $region5: #{tpu_custom_call.1} parent=1 // loop_body
      %s17 = ssub.s32 %s12, 1
      %s18 = ssub.s32 %s12, 2
      %s19 = sadd.s32 %s12, 1
      %s20 = ssub.s32 %s12, %s19
      %p21 = scmp.eq.s32.totalorder %s20, 0
      %s23 = sadd.s32 %s22, 1
      %s24 = scalar_select %p21, %s22, %s23
      %p27 = pneg %p21
      %p28 = scmp.eq.s32.totalorder %s12, 1
      %p29 = por %p27, %p28
      %p30 = scmp.ne.s32.totalorder %s22, %s25
      %p31 = scmp.eq.s32.totalorder %s12, 0
      %p32 = por %p30, %p31
      %p33 = scmp.ne.s32.totalorder %s22, %s25
      %p34 = scmp.eq.s32.totalorder %s17, 1
      %p35 = por %p33, %p34
      %p36 = scmp.ne.s32.totalorder %s25, %s26
      %p37 = scmp.eq.s32.totalorder %s17, 0
      %p38 = por %p36, %p37
      %p39 = scmp.ne.s32.totalorder %s25, %s26
      %p40 = scmp.eq.s32.totalorder %s18, 1
      %p41 = por %p39, %p40
      %p43 = scmp.ne.s32.totalorder %s26, %s42
      %p44 = scmp.eq.s32.totalorder %s18, 0
      %p45 = por %p43, %p44
      %s46 = ssub.s32 %s12, %s19
      %p47 = scmp.eq.s32.totalorder %s46, 0
      %s49 = sadd.s32 %s48, 1
      %s50 = scalar_select %p47, %s48, %s49
      %p53 = pneg %p47
      %p54 = scmp.eq.s32.totalorder %s12, 1
      %p55 = por %p53, %p54
      %p56 = scmp.ne.s32.totalorder %s48, %s51
      %p57 = scmp.eq.s32.totalorder %s12, 0
      %p58 = por %p56, %p57
      %p59 = scmp.ne.s32.totalorder %s48, %s51
      %p60 = scmp.eq.s32.totalorder %s17, 1
      %p61 = por %p59, %p60
      %p62 = scmp.ne.s32.totalorder %s51, %s52
      %p63 = scmp.eq.s32.totalorder %s17, 0
      %p64 = por %p62, %p63
      %p65 = scmp.ne.s32.totalorder %s51, %s52
      %p66 = scmp.eq.s32.totalorder %s18, 1
      %p67 = por %p65, %p66
      %p69 = scmp.ne.s32.totalorder %s52, %s68
      %p70 = scmp.eq.s32.totalorder %s18, 0
      %p71 = por %p69, %p70
      %s72 = ssub.s32 %s12, %s19
      %p73 = scmp.eq.s32.totalorder %s72, 0
      %s75 = sadd.s32 %s74, 1
      %s76 = scalar_select %p73, %s74, %s75
      %p79 = pneg %p73
      %p80 = scmp.eq.s32.totalorder %s12, 1
      %p81 = por %p79, %p80
      %p82 = scmp.ne.s32.totalorder %s74, %s77
      %p83 = scmp.eq.s32.totalorder %s12, 0
      %p84 = por %p82, %p83
      %p85 = scmp.ne.s32.totalorder %s74, %s77
      %p86 = scmp.eq.s32.totalorder %s17, 1
      %p87 = por %p85, %p86
      %p88 = scmp.ne.s32.totalorder %s77, %s78
      %p89 = scmp.eq.s32.totalorder %s17, 0
      %p90 = por %p88, %p89
      %p91 = scmp.ne.s32.totalorder %s77, %s78
      %p92 = scmp.eq.s32.totalorder %s18, 1
      %p93 = por %p91, %p92
      %p95 = scmp.ne.s32.totalorder %s78, %s94
      %p96 = scmp.eq.s32.totalorder %s18, 0
      %p97 = por %p95, %p96
      %s98 = ssub.s32 %s12, %s19
      %p99 = scmp.eq.s32.totalorder %s98, 0
      %s101 = sadd.s32 %s100, 1
      %s102 = scalar_select %p99, %s100, %s101
      %p105 = pneg %p99
      %p106 = scmp.eq.s32.totalorder %s12, 1
      %p107 = por %p105, %p106
      %p108 = scmp.ne.s32.totalorder %s100, %s103
      %p109 = scmp.eq.s32.totalorder %s12, 0
      %p110 = por %p108, %p109
      %p111 = scmp.ne.s32.totalorder %s100, %s103
      %p112 = scmp.eq.s32.totalorder %s17, 1
      %p113 = por %p111, %p112
      %p114 = scmp.ne.s32.totalorder %s103, %s104
      %p115 = scmp.eq.s32.totalorder %s17, 0
      %p116 = por %p114, %p115
      %p117 = scmp.ne.s32.totalorder %s103, %s104
      %p118 = scmp.eq.s32.totalorder %s18, 1
      %p119 = por %p117, %p118
      %p121 = scmp.ne.s32.totalorder %s104, %s120
      %p122 = scmp.eq.s32.totalorder %s18, 0
      %p123 = por %p121, %p122
      %p124 = scmp.le.s32.totalorder 1, %s12
      %p125 = scmp.lt.s32.totalorder %s12, 3
      %p126 = pnand %p124, %p125
      %p127 = pneg %p126
      // Predicated region
      $region9: #{tpu_custom_call.1} parent=5 // pred_check
        _
      $region10: #{tpu_custom_call.1} parent=5 // pred_check_branch
        %129 = sbr.rel (%p126) target = $region12
      $region11: #{tpu_custom_call.1} parent=5 // pred_region
        %s130 = ssub.s32 %s12, 1
      $region12: #{tpu_custom_call.1} parent=5 // pred_fallthru
        _
      %p131 = scmp.lt.s32.totalorder %s12, 2
      // Predicated region
      $region13: #{tpu_custom_call.1} parent=5 // pred_check
        %p132 = pneg %p131
      $region14: #{tpu_custom_call.1} parent=5 // pred_check_branch
        %134 = sbr.rel (%p132) target = $region16
      $region15: #{tpu_custom_call.1} parent=5 // pred_region
        // Predicated region
        $region17: #{tpu_custom_call.1} parent=15 // pred_check
          %p135 = pneg %p32
        $region18: #{tpu_custom_call.1} parent=15 // pred_check_branch
          %137 = sbr.rel (%p135) target = $region20
        $region19: #{tpu_custom_call.1} parent=15 // pred_region
          %p138 = scmp.lt.s32.totalorder %s12, 1
          %s139 = scalar_select %p138, %s12, 1
          %s140 = smul.addr %s139, 8
          %s141 = scalar_lea.vmem %s0, %s140
        $region20: #{tpu_custom_call.1} parent=15 // pred_fallthru
          _
        // Predicated region
        $region21: #{tpu_custom_call.1} parent=15 // pred_check
          %p142 = pneg %p58
        $region22: #{tpu_custom_call.1} parent=15 // pred_check_branch
          %144 = sbr.rel (%p142) target = $region24
        $region23: #{tpu_custom_call.1} parent=15 // pred_region
          %p145 = scmp.lt.s32.totalorder %s12, 1
          %s146 = scalar_select %p145, %s12, 1
          %s147 = smul.addr %s146, 8
          %s148 = scalar_lea.vmem %s1, %s147
        $region24: #{tpu_custom_call.1} parent=15 // pred_fallthru
          _
        // Predicated region
        $region25: #{tpu_custom_call.1} parent=15 // pred_check
          %p149 = pneg %p84
        $region26: #{tpu_custom_call.1} parent=15 // pred_check_branch
          %151 = sbr.rel (%p149) target = $region28
        $region27: #{tpu_custom_call.1} parent=15 // pred_region
          %p152 = scmp.lt.s32.totalorder %s12, 1
          %s153 = scalar_select %p152, %s12, 1
          %s154 = smul.addr %s153, 8
          %s155 = scalar_lea.vmem %s2, %s154
        $region28: #{tpu_custom_call.1} parent=15 // pred_fallthru
          _
      $region16: #{tpu_custom_call.1} parent=5 // pred_fallthru
        _
      %p156 = scmp.le.s32.totalorder 1, %s12
      %p157 = scmp.lt.s32.totalorder %s12, 3
      %p158 = pnand %p156, %p157
      %p159 = pneg %p158
      // Predicated region
      $region29: #{tpu_custom_call.1} parent=5 // pred_check
        _
      $region30: #{tpu_custom_call.1} parent=5 // pred_check_branch
        %161 = sbr.rel (%p158) target = $region32
      $region31: #{tpu_custom_call.1} parent=5 // pred_region
        %s162 = ssub.s32 %s12, 1
        %p163 = scmp.lt.s32.totalorder %s17, 1
        %s164 = scalar_select %p163, %s17, 1
        %s165 = smul.addr %s164, 8
        %s166 = scalar_lea.vmem %s0, %s165
        %p167 = pneg %p38
        %p168 = pneg %p35
        %p169 = scmp.lt.s32.totalorder %s17, 1
        %s170 = scalar_select %p169, %s17, 1
        %s171 = smul.addr %s170, 8
        %s172 = scalar_lea.vmem %s1, %s171
        %p173 = pneg %p64
        %p174 = pneg %p61
        %p175 = scmp.lt.s32.totalorder %s17, 1
        %s176 = scalar_select %p175, %s17, 1
        %s177 = smul.addr %s176, 8
        %s178 = scalar_lea.vmem %s2, %s177
        %p179 = pneg %p90
        %p180 = pneg %p87
        %p181 = pneg %p116
        %p182 = pneg %p113
        %s183 = sand.u32 %s103, 1
        %s184 = scalar_lea.sflag [#allocation3], %s183
        %s185 = sand.u32 %s103, 1
        %s186 = smul.addr %s185, 8
        %s187 = scalar_lea.vmem [#allocation2], %s186
        %p188 = scmp.lt.s32.totalorder %s17, 1
        %s189 = scalar_select %p188, %s17, 1
        %s190 = smul.addr %s189, 8
        %s191 = scalar_lea.vmem %s0, %s190
        %p192 = scmp.lt.s32.totalorder %s17, 1
        %s193 = scalar_select %p192, %s17, 1
        %s194 = smul.addr %s193, 8
        %s195 = scalar_lea.vmem %s1, %s194
        %p196 = scmp.lt.s32.totalorder %s17, 1
        %s197 = scalar_select %p196, %s17, 1
        %s198 = smul.addr %s197, 8
        %s199 = scalar_lea.vmem %s2, %s198
        %v200 = vld [vmem:[%s191] sm:$0xff]
        %v201 = vld [vmem:[%s195] sm:$0xff]
        %v202 = vld [vmem:[%s199] sm:$0xff]
        %v203 = vlaneseq
        %v204 = vshrl.u32 %v203, 7
        %s205 = smul.u32 %s17, 8
        %v206 = vstv %s205
        %v207 = vadd.s32 %v204, %v206
        %vm208 = vcmp.lt.s32.totalorder %v207, 10
        %v209 = vsel %vm208, 1, 0
        %vm210 = vcmp.eq.s32.totalorder %v209, 1
        %v211 = vsel %vm210, %v200, 0.0
        %vm212 = vcmask 56320
        %v213 = vsel %vm212, %v211, -inf
        %214 = vmax.xlane.f32.xlu0 %v213
        %v215 = vpop.xlane.xlu0 %214
        %v216 = vsub.f32 %v211, %v215
        %v217 = vmul.f32 %v216, 1.442695
        %v218 = vpow.pop %v217
        %v219 = vsel %vm212, %v218, 0.0
        %220 = vadd.xlane.f32.xlu0 %v219
        %v221 = vpop.xlane.xlu0 %220
        %v222 = vlog2.pop %v221
        %v223 = vmul.f32 %v222, 0.6931472
        %v224 = vadd.f32 %v215, %v223
        %v225 = vlaneseq
        %v226 = vand.u32 %v225, 127
        %227 = vset.pattern.permute.xlu0 0
        %228 = vperm.xlu0 %227, %v201
        %v229 = vpop.permute.xlu0 %228
        %vm230 = vcmp.eq.s32.totalorder %v226, %v229
        %v231 = vsel %vm230, %v211, 0.0
        %v232 = vsel %vm212, %v231, 0.0
        %233 = vadd.xlane.f32.xlu0 %v232
        %v234 = vpop.xlane.xlu0 %233
        %v235 = vsub.f32 %v224, %v234
        %v236 = vmul.f32 %v202, %v235
        %v237 = vsel %vm208, %v236, 0.0
        %vm238 = vcmask 7168
        %v239 = vsel %vm238, %v237, 0.0
        %240 = vadd.xlane.f32.xlu0 %v239
        %v241 = vpop.xlane.xlu0 %240
        %v242 = vrot.slane %v241, 4
        %v243 = vadd.f32 %v241, %v242
        %v244 = vrot.slane %v243, 2
        %v245 = vadd.f32 %v243, %v244
        %v246 = vrot.slane %v245, 1
        %v247 = vadd.f32 %v245, %v246
        %s248 = vtos %v247
        %v249 = vstv %s248
        %250 = vst [vmem:[%s187] sm:$0xff] %v249
        %s251 = sand.u32 %s103, 1
        %s252 = scalar_lea.sflag [#allocation3], %s251
        %s253 = sand.u32 %s103, 1
        %s254 = smul.addr %s253, 8
        %s255 = scalar_lea.vmem [#allocation2], %s254
        // Predicated region
        $region33: #{tpu_custom_call.1} parent=31 // pred_check
          %p256 = pneg %p113
        $region34: #{tpu_custom_call.1} parent=31 // pred_check_branch
          %258 = sbr.rel (%p256) target = $region36
        $region35: #{tpu_custom_call.1} parent=31 // pred_region
          %s260 = ssub.s32 128, 128
          %261 = vsyncadd %s252, %s260
          %s262 = smul.addr %s17, 128
          %s263 = scalar_lea.hbm %s3, %s262
          %s265 = sshll.u32 %s255, 4
          %s266 = int_to_ptr.vmem [resolvable:$true] %s265
          %268 = dma.vmem_to_hbm [thread:$0]  %s266, 128, %s263, %s252
        $region36: #{tpu_custom_call.1} parent=31 // pred_fallthru
          _
      $region32: #{tpu_custom_call.1} parent=5 // pred_fallthru
        _
      %p269 = scmp.le.s32.totalorder 2, %s12
      // Predicated region
      $region37: #{tpu_custom_call.1} parent=5 // pred_check
        %p270 = pneg %p269
      $region38: #{tpu_custom_call.1} parent=5 // pred_check_branch
        %272 = sbr.rel (%p270) target = $region40
      $region39: #{tpu_custom_call.1} parent=5 // pred_region
        %s273 = ssub.s32 %s12, 2
        // Predicated region
        $region41: #{tpu_custom_call.1} parent=39 // pred_check
          %p274 = pneg %p119
        $region42: #{tpu_custom_call.1} parent=39 // pred_check_branch
          %276 = sbr.rel (%p274) target = $region44
        $region43: #{tpu_custom_call.1} parent=39 // pred_region
          %s277 = sand.u32 %s104, 1
          %s278 = scalar_lea.sflag [#allocation3], %s277
          %s279 = sand.u32 %s104, 1
          %s280 = smul.addr %s279, 8
          %s281 = scalar_lea.vmem [#allocation2], %s280
          %282 = dma.done %s278, 128
        $region44: #{tpu_custom_call.1} parent=39 // pred_fallthru
          _
      $region40: #{tpu_custom_call.1} parent=5 // pred_fallthru
        _
    $region6: #{tpu_custom_call.1} parent=1 // loop_footer
      %s16 = sadd.s32 1, %s12
    $region7: #{tpu_custom_call.1} parent=1 // loop_footer_branch
      %11 = sbr.rel target = $region3
    $region8: #{tpu_custom_call.1} parent=1 // loop_exit
      _
    %283 = vsyncpa [#allocation3], 1
    %s284 = scalar_lea.sflag [#allocation3], 1
    %285 = vsyncpa %s284, 1

</llo_original>
